<compile_context>
chip_gen: v5e
topology: v5e:2x2
jax: 0.10.0
libtpu: 0.0.40
codegen_flags: <defaults>
</compile_context>

<pallas_src>
import jax
import jax.numpy as jnp
from jax.experimental import pallas as pl
from jax.experimental.pallas import tpu as pltpu

BITS = 5
COUNT = 10
SIZE = 1 << BITS            # 32  (softmax group width)
HIDDEN = 100                # logical hidden width (matches PyTorch)
HIDDEN_PAD = 128            # hidden width padded to a full 128-lane tile
IN_DIM = COUNT * BITS       # 50
IN_PAD = 64                 # input width padded so the packed weight slab stays tile-aligned
OUT_DIM = COUNT * SIZE      # 320
BATCH = 24                  # demo batch; multiple of 8 avoids masked sublane work


def net_kernel(x_ref, w123_ref, w4_ref, b_ref, o_ref):
    x = x_ref[...]                                          # (B, 64) f32, cols 50.. are 0

    # Static, sublane-tile-aligned views into the packed bf16 weight slab.
    w1 = w123_ref[0:IN_PAD, :]                              # (64, 128) bf16
    w2 = w123_ref[IN_PAD:IN_PAD + HIDDEN_PAD, :]            # (128, 128) bf16
    w3 = w123_ref[IN_PAD + HIDDEN_PAD:, :]                  # (128, 128) bf16
    b1 = b_ref[0:1, 0:HIDDEN_PAD]                           # (1, 128) f32
    b2 = b_ref[1:2, 0:HIDDEN_PAD]
    b3 = b_ref[2:3, 0:HIDDEN_PAD]
    b4 = b_ref[3:4, :]                                      # (1, 320) f32

    # Linear(50->100, padded 64->128) + ReLU.  bf16 MXU operands, f32 accumulate.
    h = jnp.dot(x.astype(jnp.bfloat16), w1, preferred_element_type=jnp.float32) + b1
    h = jnp.maximum(h, 0.0)
    # Linear(128->128) + Tanh
    h = jnp.dot(h.astype(jnp.bfloat16), w2, preferred_element_type=jnp.float32) + b2
    h = jnp.tanh(h)
    # Linear(128->128) + ReLU
    h = jnp.dot(h.astype(jnp.bfloat16), w3, preferred_element_type=jnp.float32) + b3
    h = jnp.maximum(h, 0.0)
    # Linear(128->320): logits, COUNT contiguous groups of SIZE lanes.
    z = jnp.dot(h.astype(jnp.bfloat16), w4_ref[...],
                preferred_element_type=jnp.float32) + b4    # (B, 320) f32

    # Grouped softmax over each 32-lane group, vectorized over all 320 lanes.
    #  - the row max is constant across every group of that row, so subtracting
    #    it leaves each group's softmax unchanged and keeps exp() safe;
    #  - the block-diagonal 0/1 matrix (1 iff same 32-wide group) is built
    #    in-kernel from iota planes (cheap VPU work, no 400 KiB HBM DMA) and a
    #    single matmul gives every lane its group's sum;
    #  - clamp + approx EUP reciprocal + one Newton step: no inf/NaN even if a
    #    whole group underflows, and rows sum to 1 to ~1e-6.
    m = jnp.max(z, axis=-1, keepdims=True)                  # (B, 1)
    e = jnp.exp(z - m)                                      # (B, 320)
    row_g = jax.lax.broadcasted_iota(jnp.int32, (OUT_DIM, OUT_DIM), 0) >> BITS
    col_g = jax.lax.broadcasted_iota(jnp.int32, (OUT_DIM, OUT_DIM), 1) >> BITS
    gmat = jnp.where(row_g == col_g, 1.0, 0.0).astype(jnp.float32)
    denom = jnp.dot(e, gmat, preferred_element_type=jnp.float32)   # (B, 320)
    denom = jnp.maximum(denom, 1e-30)
    r = pl.reciprocal(denom, approx=True)
    r = r * (2.0 - denom * r)                               # one Newton step
    o_ref[...] = (e * r).astype(o_ref.dtype)


@jax.jit
def net_forward(x, packed):
    """x: (B, 50) f32; packed: (w123 bf16 (320,128), w4 bf16 (128,320), bvec f32 (4,320))."""
    w123, w4, bvec = packed
    batch = x.shape[0]
    x_pad = jnp.zeros((batch, IN_PAD), jnp.float32).at[:, :IN_DIM].set(x)

    vmem = pl.BlockSpec(memory_space=pltpu.MemorySpace.VMEM)
    flops = 2 * batch * (IN_PAD * HIDDEN_PAD + 2 * HIDDEN_PAD * HIDDEN_PAD
                         + HIDDEN_PAD * OUT_DIM + OUT_DIM * OUT_DIM)
    transcendentals = batch * (HIDDEN_PAD + 2 * OUT_DIM)    # tanh + exp + rcp
    bytes_accessed = (x_pad.size * 4 + w123.size * 2 + w4.size * 2
                      + bvec.size * 4 + batch * OUT_DIM * 4)

    out_flat = pl.pallas_call(
        net_kernel,
        out_shape=jax.ShapeDtypeStruct((batch, OUT_DIM), jnp.float32),
        in_specs=[vmem] * 4,
        out_specs=vmem,
        cost_estimate=pl.CostEstimate(flops=flops,
                                      transcendentals=transcendentals,
                                      bytes_accessed=bytes_accessed),
    )(x_pad, w123, w4, bvec)

    # Free row-major reshape to the PyTorch View(count, size) output layout.
    return out_flat.reshape(batch, COUNT, SIZE)


def init_params(key):
    """nn.Linear-style init U(-1/sqrt(fan_in), 1/sqrt(fan_in)) on the logical
    shapes, zero-padded (inert: relu(0)=0, tanh(0)=0, padded weight rows are 0),
    then packed into 3 HBM buffers with bf16 weight storage."""
    logical = [(IN_DIM, HIDDEN), (HIDDEN, HIDDEN), (HIDDEN, HIDDEN), (HIDDEN, OUT_DIM)]
    padded = [(IN_PAD, HIDDEN_PAD), (HIDDEN_PAD, HIDDEN_PAD),
              (HIDDEN_PAD, HIDDEN_PAD), (HIDDEN_PAD, OUT_DIM)]
    ws, bs = [], []
    for (fi, fo), (pi, po) in zip(logical, padded):
        key, kw, kb = jax.random.split(key, 3)
        bound = 1.0 / float(fi) ** 0.5
        w = jax.random.uniform(kw, (fi, fo), jnp.float32, -bound, bound)
        b = jax.random.uniform(kb, (fo,), jnp.float32, -bound, bound)
        ws.append(jnp.zeros((pi, po), jnp.float32).at[:fi, :fo].set(w))
        bs.append(jnp.zeros((po,), jnp.float32).at[:fo].set(b))

    w123 = jnp.concatenate(ws[:3], axis=0).astype(jnp.bfloat16)     # (320, 128)
    w4 = ws[3].astype(jnp.bfloat16)                                  # (128, 320)
    bvec = (jnp.zeros((4, OUT_DIM), jnp.float32)
            .at[0, :HIDDEN_PAD].set(bs[0])
            .at[1, :HIDDEN_PAD].set(bs[1])
            .at[2, :HIDDEN_PAD].set(bs[2])
            .at[3, :].set(bs[3]))
    packed = (w123, w4, bvec)

    # Reference weights = the exact (bf16-quantized) network the kernel
    # evaluates, dequantized to f32 for a pure-JAX f32 reference.
    ref_ws = [w123[0:IN_PAD].astype(jnp.float32),
              w123[IN_PAD:IN_PAD + HIDDEN_PAD].astype(jnp.float32),
              w123[IN_PAD + HIDDEN_PAD:].astype(jnp.float32),
              w4.astype(jnp.float32)]
    return packed, ref_ws, bs


def reference_forward(x, ref_ws, bs):
    xp = jnp.zeros((x.shape[0], IN_PAD), jnp.float32).at[:, :IN_DIM].set(x)
    h = jnp.maximum(xp @ ref_ws[0] + bs[0], 0.0)
    h = jnp.tanh(h @ ref_ws[1] + bs[1])
    h = jnp.maximum(h @ ref_ws[2] + bs[2], 0.0)
    z = (h @ ref_ws[3] + bs[3]).reshape(x.shape[0], COUNT, SIZE)
    return jax.nn.softmax(z, axis=2)


if __name__ == "__main__":
    key = jax.random.PRNGKey(0)
    key, kx = jax.random.split(key)
    x = jax.random.normal(kx, (BATCH, IN_DIM), jnp.float32)
    packed, ref_ws, ref_bs = init_params(key)

    out = jax.block_until_ready(net_forward(x, packed))
    ref = reference_forward(x, ref_ws, ref_bs)

    assert out.shape == (BATCH, COUNT, SIZE)
    # bf16 activation casts before each MXU dot => slightly looser than f32.
    assert bool(jnp.allclose(out, ref, atol=1e-2, rtol=5e-2))
    # Newton-corrected reciprocal: softmax rows normalize essentially exactly.
    assert bool(jnp.allclose(jnp.sum(out, axis=2), 1.0, atol=1e-3))
    print("KERNEL_OK")
</pallas_src>

<mosaic_0001>
module attributes {stable_mosaic.version = 11 : i64} {
  func.func @net_kernel(%arg0: memref<24x64xf32, #tpu.memory_space<vmem>>, %arg1: memref<320x128xbf16, #tpu.memory_space<vmem>>, %arg2: memref<128x320xbf16, #tpu.memory_space<vmem>>, %arg3: memref<4x320xf32, #tpu.memory_space<vmem>>, %arg4: memref<24x320xf32, #tpu.memory_space<vmem>>) attributes {dimension_semantics = [], scalar_prefetch = 0 : i64, scratch_operands = 0 : i64, tpu.core_type = #tpu.core_type<tc>} {
    %c0 = arith.constant 0 : index
    %c0_0 = arith.constant 0 : index
    %0 = vector.load %arg0[%c0, %c0_0] : memref<24x64xf32, #tpu.memory_space<vmem>>, vector<24x64xf32>
    %c0_1 = arith.constant 0 : index
    %c0_2 = arith.constant 0 : index
    %1 = vector.load %arg1[%c0_1, %c0_2] : memref<320x128xbf16, #tpu.memory_space<vmem>>, vector<64x128xbf16>
    %c64 = arith.constant 64 : index
    %c0_3 = arith.constant 0 : index
    %2 = vector.load %arg1[%c64, %c0_3] : memref<320x128xbf16, #tpu.memory_space<vmem>>, vector<128x128xbf16>
    %c192 = arith.constant 192 : index
    %c0_4 = arith.constant 0 : index
    %3 = vector.load %arg1[%c192, %c0_4] : memref<320x128xbf16, #tpu.memory_space<vmem>>, vector<128x128xbf16>
    %c0_5 = arith.constant 0 : index
    %c0_6 = arith.constant 0 : index
    %4 = vector.load %arg3[%c0_5, %c0_6] : memref<4x320xf32, #tpu.memory_space<vmem>>, vector<1x128xf32>
    %c1 = arith.constant 1 : index
    %c0_7 = arith.constant 0 : index
    %5 = vector.load %arg3[%c1, %c0_7] : memref<4x320xf32, #tpu.memory_space<vmem>>, vector<1x128xf32>
    %c2 = arith.constant 2 : index
    %c0_8 = arith.constant 0 : index
    %6 = vector.load %arg3[%c2, %c0_8] : memref<4x320xf32, #tpu.memory_space<vmem>>, vector<1x128xf32>
    %c3 = arith.constant 3 : index
    %c0_9 = arith.constant 0 : index
    %7 = vector.load %arg3[%c3, %c0_9] : memref<4x320xf32, #tpu.memory_space<vmem>>, vector<1x320xf32>
    %8 = arith.truncf %0 : vector<24x64xf32> to vector<24x64xbf16>
    %cst = arith.constant dense<0.000000e+00> : vector<24x128xf32>
    %9 = tpu.matmul %8, %1, %cst {dimension_numbers = #tpu.dot_dimension_numbers<[1], [0], [0], [1], [0, 0, 1, 1], [], []>} : vector<24x64xbf16>, vector<64x128xbf16>, vector<24x128xf32> -> vector<24x128xf32>
    %10 = vector.broadcast %4 : vector<1x128xf32> to vector<24x128xf32>
    %11 = arith.addf %9, %10 : vector<24x128xf32>
    %cst_10 = arith.constant 0.000000e+00 : f32
    %12 = vector.broadcast %cst_10 : f32 to vector<24x128xf32>
    %13 = arith.maximumf %11, %12 : vector<24x128xf32>
    %14 = arith.truncf %13 : vector<24x128xf32> to vector<24x128xbf16>
    %cst_11 = arith.constant dense<0.000000e+00> : vector<24x128xf32>
    %15 = tpu.matmul %14, %2, %cst_11 {dimension_numbers = #tpu.dot_dimension_numbers<[1], [0], [0], [1], [0, 0, 1, 1], [], []>} : vector<24x128xbf16>, vector<128x128xbf16>, vector<24x128xf32> -> vector<24x128xf32>
    %16 = vector.broadcast %5 : vector<1x128xf32> to vector<24x128xf32>
    %17 = arith.addf %15, %16 : vector<24x128xf32>
    %18 = math.tanh %17 : vector<24x128xf32>
    %19 = arith.truncf %18 : vector<24x128xf32> to vector<24x128xbf16>
    %cst_12 = arith.constant dense<0.000000e+00> : vector<24x128xf32>
    %20 = tpu.matmul %19, %3, %cst_12 {dimension_numbers = #tpu.dot_dimension_numbers<[1], [0], [0], [1], [0, 0, 1, 1], [], []>} : vector<24x128xbf16>, vector<128x128xbf16>, vector<24x128xf32> -> vector<24x128xf32>
    %21 = vector.broadcast %6 : vector<1x128xf32> to vector<24x128xf32>
    %22 = arith.addf %20, %21 : vector<24x128xf32>
    %cst_13 = arith.constant 0.000000e+00 : f32
    %23 = vector.broadcast %cst_13 : f32 to vector<24x128xf32>
    %24 = arith.maximumf %22, %23 : vector<24x128xf32>
    %25 = arith.truncf %24 : vector<24x128xf32> to vector<24x128xbf16>
    %c0_14 = arith.constant 0 : index
    %c0_15 = arith.constant 0 : index
    %26 = vector.load %arg2[%c0_14, %c0_15] : memref<128x320xbf16, #tpu.memory_space<vmem>>, vector<128x320xbf16>
    %cst_16 = arith.constant dense<0.000000e+00> : vector<24x320xf32>
    %27 = tpu.matmul %25, %26, %cst_16 {dimension_numbers = #tpu.dot_dimension_numbers<[1], [0], [0], [1], [0, 0, 1, 1], [], []>} : vector<24x128xbf16>, vector<128x320xbf16>, vector<24x320xf32> -> vector<24x320xf32>
    %28 = vector.broadcast %7 : vector<1x320xf32> to vector<24x320xf32>
    %29 = arith.addf %27, %28 : vector<24x320xf32>
    %cst_17 = arith.constant dense<0xFF800000> : vector<24xf32>
    %30 = vector.multi_reduction <maximumf>, %29, %cst_17 [1] : vector<24x320xf32> to vector<24xf32>
    %31 = vector.shape_cast %30 : vector<24xf32> to vector<24x1xf32>
    %32 = vector.broadcast %31 : vector<24x1xf32> to vector<24x320xf32>
    %33 = arith.subf %29, %32 : vector<24x320xf32>
    %34 = math.exp %33 : vector<24x320xf32>
    %35 = tpu.iota {dimensions = array<i32: 0>} : vector<320x320xi32>
    %c5_i32 = arith.constant 5 : i32
    %36 = vector.broadcast %c5_i32 : i32 to vector<320x320xi32>
    %37 = arith.shrsi %35, %36 : vector<320x320xi32>
    %38 = tpu.iota {dimensions = array<i32: 1>} : vector<320x320xi32>
    %c5_i32_18 = arith.constant 5 : i32
    %39 = vector.broadcast %c5_i32_18 : i32 to vector<320x320xi32>
    %40 = arith.shrsi %38, %39 : vector<320x320xi32>
    %41 = arith.cmpi eq, %37, %40 : vector<320x320xi32>
    %cst_19 = arith.constant 1.000000e+00 : f32
    %cst_20 = arith.constant 0.000000e+00 : f32
    %42 = vector.broadcast %cst_19 : f32 to vector<320x320xf32>
    %43 = vector.broadcast %cst_20 : f32 to vector<320x320xf32>
    %44 = arith.select %41, %42, %43 : vector<320x320xi1>, vector<320x320xf32>
    %cst_21 = arith.constant dense<0.000000e+00> : vector<24x320xf32>
    %45 = tpu.matmul %34, %44, %cst_21 {dimension_numbers = #tpu.dot_dimension_numbers<[1], [0], [0], [1], [0, 0, 1, 1], [], []>} : vector<24x320xf32>, vector<320x320xf32>, vector<24x320xf32> -> vector<24x320xf32>
    %cst_22 = arith.constant 1.000000e-30 : f32
    %46 = vector.broadcast %cst_22 : f32 to vector<24x320xf32>
    %47 = arith.maximumf %45, %46 : vector<24x320xf32>
    %48 = tpu.reciprocal %47 {approx = true} : vector<24x320xf32> -> vector<24x320xf32>
    %49 = arith.mulf %47, %48 : vector<24x320xf32>
    %cst_23 = arith.constant 2.000000e+00 : f32
    %50 = vector.broadcast %cst_23 : f32 to vector<24x320xf32>
    %51 = arith.subf %50, %49 : vector<24x320xf32>
    %52 = arith.mulf %48, %51 : vector<24x320xf32>
    %53 = arith.mulf %34, %52 : vector<24x320xf32>
    %c0_24 = arith.constant 0 : index
    %c0_25 = arith.constant 0 : index
    %54 = vector.load %arg4[%c0_24, %c0_25] : memref<24x320xf32, #tpu.memory_space<vmem>>, vector<24x320xf32>
    tpu.vector_store %arg4[%c0_24, %c0_25], %53 {strides = array<i32>} : memref<24x320xf32, #tpu.memory_space<vmem>>, vector<24x320xf32>,
    return
  }
}

</mosaic_0001>

<llo_original>
// kernel: net_forward.1
$region0: #{net_forward.1}
  #allocation0 [shape = 'u32[]', space=smem, size = 0x4, offset = 0x4, fixed_abs, tag = 'smem constant byte address 0x4 - core index']
  #allocation1 [shape = 'u32[72,128]{1,0:T(1,128)}', space=vmem, size = 0x9000, scoped, tag = 'internal scratch']
  %s0 = inlined_call_operand.vmem [shape: f32[24,64], index: 0, kind: input, shape index: {}]
  %s1 = inlined_call_operand.vmem [shape: bf16[320,128], index: 1, kind: input, shape index: {}]
  %s2 = inlined_call_operand.vmem [shape: bf16[128,320], index: 2, kind: input, shape index: {}]
  %s3 = inlined_call_operand.vmem [shape: f32[4,320], index: 3, kind: input, shape index: {}]
  %s4 = inlined_call_operand.vmem [shape: f32[24,320], index: 4, kind: output, shape index: {}]
  %s5 = sld [smem:[#allocation0]]
  $region26: #{net_forward.1} parent=0
    _
  %s7 = ssub.s32 1, %s5
  %s8 = scalar_select 0, %s7, %s5
  // Predicated region
  $region2: #{net_forward.1} parent=0 // pred_check
    _
  $region3: #{net_forward.1} parent=0 // pred_check_branch
    %10 = sbr.rel (0) target = $region5
  $region4: #{net_forward.1} parent=0 // pred_region
    _
  $region5: #{net_forward.1} parent=0 // pred_fallthru
    _
  // Predicated region
  $region6: #{net_forward.1} parent=0 // pred_check
    _
  $region7: #{net_forward.1} parent=0 // pred_check_branch
    %12 = sbr.rel (0) target = $region9
  $region8: #{net_forward.1} parent=0 // pred_region
    _
  $region9: #{net_forward.1} parent=0 // pred_fallthru
    _
  // Predicated region
  $region10: #{net_forward.1} parent=0 // pred_check
    _
  $region11: #{net_forward.1} parent=0 // pred_check_branch
    %14 = sbr.rel (0) target = $region13
  $region12: #{net_forward.1} parent=0 // pred_region
    _
  $region13: #{net_forward.1} parent=0 // pred_fallthru
    _
  // Predicated region
  $region14: #{net_forward.1} parent=0 // pred_check
    _
  $region15: #{net_forward.1} parent=0 // pred_check_branch
    %16 = sbr.rel (0) target = $region17
  $region16: #{net_forward.1} parent=0 // pred_region
    _
  $region17: #{net_forward.1} parent=0 // pred_fallthru
    _
  %v18 = vld [vmem:[%s0] sm:$0xff]
  %v19 = vld [vmem:[%s0 + $0x8] sm:$0xff]
  %v20 = vld [vmem:[%s0 + $0x10] sm:$0xff]
  %v21 = vld [vmem:[%s1] sm:$0xf]
  %v22 = vld [vmem:[%s1 + $0x4] sm:$0xf]
  %v23 = vld [vmem:[%s1 + $0x8] sm:$0xf]
  %v24 = vld [vmem:[%s1 + $0xc] sm:$0xf]
  %v25 = vld [vmem:[%s1 + $0x10] sm:$0xf]
  %v26 = vld [vmem:[%s1 + $0x14] sm:$0xf]
  %v27 = vld [vmem:[%s1 + $0x18] sm:$0xf]
  %v28 = vld [vmem:[%s1 + $0x1c] sm:$0xf]
  %v29 = vld [vmem:[%s1 + $0x20] sm:$0xf]
  %v30 = vld [vmem:[%s1 + $0x24] sm:$0xf]
  %v31 = vld [vmem:[%s1 + $0x28] sm:$0xf]
  %v32 = vld [vmem:[%s1 + $0x2c] sm:$0xf]
  %v33 = vld [vmem:[%s1 + $0x30] sm:$0xf]
  %v34 = vld [vmem:[%s1 + $0x34] sm:$0xf]
  %v35 = vld [vmem:[%s1 + $0x38] sm:$0xf]
  %v36 = vld [vmem:[%s1 + $0x3c] sm:$0xf]
  %v37 = vld [vmem:[%s1 + $0x40] sm:$0xf]
  %v38 = vld [vmem:[%s1 + $0x44] sm:$0xf]
  %v39 = vld [vmem:[%s1 + $0x48] sm:$0xf]
  %v40 = vld [vmem:[%s1 + $0x4c] sm:$0xf]
  %v41 = vld [vmem:[%s1 + $0x50] sm:$0xf]
  %v42 = vld [vmem:[%s1 + $0x54] sm:$0xf]
  %v43 = vld [vmem:[%s1 + $0x58] sm:$0xf]
  %v44 = vld [vmem:[%s1 + $0x5c] sm:$0xf]
  %v45 = vld [vmem:[%s1 + $0x60] sm:$0xf]
  %v46 = vld [vmem:[%s1 + $0x64] sm:$0xf]
  %v47 = vld [vmem:[%s1 + $0x68] sm:$0xf]
  %v48 = vld [vmem:[%s1 + $0x6c] sm:$0xf]
  %v49 = vld [vmem:[%s1 + $0x70] sm:$0xf]
  %v50 = vld [vmem:[%s1 + $0x74] sm:$0xf]
  %v51 = vld [vmem:[%s1 + $0x78] sm:$0xf]
  %v52 = vld [vmem:[%s1 + $0x7c] sm:$0xf]
  %v53 = vld [vmem:[%s1 + $0x80] sm:$0xf]
  %v54 = vld [vmem:[%s1 + $0x84] sm:$0xf]
  %v55 = vld [vmem:[%s1 + $0x88] sm:$0xf]
  %v56 = vld [vmem:[%s1 + $0x8c] sm:$0xf]
  %v57 = vld [vmem:[%s1 + $0x90] sm:$0xf]
  %v58 = vld [vmem:[%s1 + $0x94] sm:$0xf]
  %v59 = vld [vmem:[%s1 + $0x98] sm:$0xf]
  %v60 = vld [vmem:[%s1 + $0x9c] sm:$0xf]
  %v61 = vld [vmem:[%s3] sm:$0x1]
  %v62 = vld [vmem:[%s3 + $0x1] sm:$0x1]
  %v63 = vld [vmem:[%s3 + $0x2] sm:$0x1]
  %s64 = scalar_lea.vmem %s3, 3
  %v65 = vld [vmem:[%s64] ss:$4 sm:$0x7]
  %v66 = vpack.c.bf16 %v19, %v18
  %v67 = vpack.c.bf16 %v20, %v20
  %v68 = vperm.slane %v61, 0
  %v77 = vunpack.c.l.b16 %v21
  %v78 = vunpack.c.l.b16 %v22
  %v79 = vunpack.c.l.b16 %v23
  %v80 = vunpack.c.l.b16 %v24
  %v81 = vunpack.c.l.b16 %v25
  %v82 = vunpack.c.l.b16 %v26
  %v83 = vunpack.c.l.b16 %v27
  %v84 = vunpack.c.l.b16 %v28
  %v85 = vpack.c.b16 %v78, %v77
  %v86 = vpack.c.b16 %v80, %v79
  %v87 = vpack.c.b16 %v82, %v81
  %v88 = vpack.c.b16 %v84, %v83
  %vm93 = vcmask 523264
  %v95 = vsel %vm93, %v66, 0
  %v98 = vsel %vm93, %v67, 0
  %100 = vmatpush.bf16.msra.mxu0 0
  %101 = vmatpush.bf16.msra.mxu0 0
  %102 = vmatpush.bf16.msra.mxu0 0
  %103 = vmatpush.bf16.msra.mxu0 0
  %104 = vmatpush.bf16.msra.mxu0 %v88
  %105 = vmatpush.bf16.msra.mxu0 %v87
  %106 = vmatpush.bf16.msra.mxu0 %v86
  %107 = vmatpush.bf16.msra.mxu0 %v85
  %108 = vmatmul.bf16.gmra.mxu0 %v95
  %v109 = vpop.f32.mrf.mxu0
  %v110 = vadd.f32 %v68, %v109
  %v111 = vpop.f32.mrf.mxu0
  %v112 = vadd.f32 %v68, %v111
  %113 = vmatmul.bf16.gmra.mxu0 %v98
  %v114 = vpop.f32.mrf.mxu0
  %v115 = vadd.f32 %v68, %v114
  %v116 = vpop.f32.mrf.mxu0
  %117 = vdwg.mxu0
  %v118 = vmax.f32 %v110, 0.0
  %v119 = vmax.f32 %v112, 0.0
  %v120 = vmax.f32 %v115, 0.0
  %v121 = vpack.c.bf16 %v119, %v118
  %v122 = vpack.c.bf16 %v120, %v120
  %v123 = vperm.slane %v62, 0
  %v140 = vunpack.c.l.b16 %v29
  %v141 = vunpack.c.l.b16 %v30
  %v142 = vunpack.c.l.b16 %v31
  %v143 = vunpack.c.l.b16 %v32
  %v144 = vunpack.c.l.b16 %v33
  %v145 = vunpack.c.l.b16 %v34
  %v146 = vunpack.c.l.b16 %v35
  %v147 = vunpack.c.l.b16 %v36
  %v148 = vunpack.c.l.b16 %v37
  %v149 = vunpack.c.l.b16 %v38
  %v150 = vunpack.c.l.b16 %v39
  %v151 = vunpack.c.l.b16 %v40
  %v152 = vunpack.c.l.b16 %v41
  %v153 = vunpack.c.l.b16 %v42
  %v154 = vunpack.c.l.b16 %v43
  %v155 = vunpack.c.l.b16 %v44
  %v156 = vpack.c.b16 %v141, %v140
  %v157 = vpack.c.b16 %v143, %v142
  %v158 = vpack.c.b16 %v145, %v144
  %v159 = vpack.c.b16 %v147, %v146
  %v160 = vpack.c.b16 %v149, %v148
  %v161 = vpack.c.b16 %v151, %v150
  %v162 = vpack.c.b16 %v153, %v152
  %v163 = vpack.c.b16 %v155, %v154
  %172 = vmatpush.bf16.msra.mxu0 %v163
  %173 = vmatpush.bf16.msra.mxu0 %v162
  %174 = vmatpush.bf16.msra.mxu0 %v161
  %175 = vmatpush.bf16.msra.mxu0 %v160
  %176 = vmatpush.bf16.msra.mxu0 %v159
  %177 = vmatpush.bf16.msra.mxu0 %v158
  %178 = vmatpush.bf16.msra.mxu0 %v157
  %179 = vmatpush.bf16.msra.mxu0 %v156
  %180 = vmatmul.bf16.gmra.mxu0 %v121
  %v181 = vpop.f32.mrf.mxu0
  %v182 = vadd.f32 %v123, %v181
  %v183 = vpop.f32.mrf.mxu0
  %v184 = vadd.f32 %v123, %v183
  %185 = vmatmul.bf16.gmra.mxu0 %v122
  %v186 = vpop.f32.mrf.mxu0
  %v187 = vadd.f32 %v123, %v186
  %v188 = vpop.f32.mrf.mxu0
  %189 = vdwg.mxu0
  %v190 = vtanh.pop %v182
  %v191 = vtanh.pop %v184
  %v192 = vtanh.pop %v187
  %v193 = vpack.c.bf16 %v191, %v190
  %v194 = vpack.c.bf16 %v192, %v192
  %v195 = vperm.slane %v63, 0
  %v212 = vunpack.c.l.b16 %v45
  %v213 = vunpack.c.l.b16 %v46
  %v214 = vunpack.c.l.b16 %v47
  %v215 = vunpack.c.l.b16 %v48
  %v216 = vunpack.c.l.b16 %v49
  %v217 = vunpack.c.l.b16 %v50
  %v218 = vunpack.c.l.b16 %v51
  %v219 = vunpack.c.l.b16 %v52
  %v220 = vunpack.c.l.b16 %v53
  %v221 = vunpack.c.l.b16 %v54
  %v222 = vunpack.c.l.b16 %v55
  %v223 = vunpack.c.l.b16 %v56
  %v224 = vunpack.c.l.b16 %v57
  %v225 = vunpack.c.l.b16 %v58
  %v226 = vunpack.c.l.b16 %v59
  %v227 = vunpack.c.l.b16 %v60
  %v228 = vpack.c.b16 %v213, %v212
  %v229 = vpack.c.b16 %v215, %v214
  %v230 = vpack.c.b16 %v217, %v216
  %v231 = vpack.c.b16 %v219, %v218
  %v232 = vpack.c.b16 %v221, %v220
  %v233 = vpack.c.b16 %v223, %v222
  %v234 = vpack.c.b16 %v225, %v224
  %v235 = vpack.c.b16 %v227, %v226
  %244 = vmatpush.bf16.msra.mxu0 %v235
  %245 = vmatpush.bf16.msra.mxu0 %v234
  %246 = vmatpush.bf16.msra.mxu0 %v233
  %247 = vmatpush.bf16.msra.mxu0 %v232
  %248 = vmatpush.bf16.msra.mxu0 %v231
  %249 = vmatpush.bf16.msra.mxu0 %v230
  %250 = vmatpush.bf16.msra.mxu0 %v229
  %251 = vmatpush.bf16.msra.mxu0 %v228
  %252 = vmatmul.bf16.gmra.mxu0 %v193
  %v253 = vpop.f32.mrf.mxu0
  %v254 = vadd.f32 %v195, %v253
  %v255 = vpop.f32.mrf.mxu0
  %v256 = vadd.f32 %v195, %v255
  %257 = vmatmul.bf16.gmra.mxu0 %v194
  %v258 = vpop.f32.mrf.mxu0
  %v259 = vadd.f32 %v195, %v258
  %v260 = vpop.f32.mrf.mxu0
  %261 = vdwg.mxu0
  %v262 = vmax.f32 %v254, 0.0
  %v263 = vmax.f32 %v256, 0.0
  %v264 = vmax.f32 %v259, 0.0
  %v265 = vpack.c.bf16 %v263, %v262
  %v266 = vpack.c.bf16 %v264, %v264
  %v267 = vld [vmem:[%s2] sm:$0xff]
  %v268 = vld [vmem:[%s2 + $0x8] sm:$0xf]
  %v269 = vld [vmem:[%s2 + $0xc] sm:$0xff]
  %v270 = vld [vmem:[%s2 + $0x14] sm:$0xf]
  %v271 = vld [vmem:[%s2 + $0x18] sm:$0xff]
  %v272 = vld [vmem:[%s2 + $0x20] sm:$0xf]
  %v273 = vld [vmem:[%s2 + $0x24] sm:$0xff]
  %v274 = vld [vmem:[%s2 + $0x2c] sm:$0xf]
  %v275 = vld [vmem:[%s2 + $0x30] sm:$0xff]
  %v276 = vld [vmem:[%s2 + $0x38] sm:$0xf]
  %v277 = vld [vmem:[%s2 + $0x3c] sm:$0xff]
  %v278 = vld [vmem:[%s2 + $0x44] sm:$0xf]
  %v279 = vld [vmem:[%s2 + $0x48] sm:$0xff]
  %v280 = vld [vmem:[%s2 + $0x50] sm:$0xf]
  %v281 = vld [vmem:[%s2 + $0x54] sm:$0xff]
  %v282 = vld [vmem:[%s2 + $0x5c] sm:$0xf]
  %v283 = vld [vmem:[%s2 + $0x60] sm:$0xff]
  %v284 = vld [vmem:[%s2 + $0x68] sm:$0xf]
  %v285 = vld [vmem:[%s2 + $0x6c] sm:$0xff]
  %v286 = vld [vmem:[%s2 + $0x74] sm:$0xf]
  %v287 = vld [vmem:[%s2 + $0x78] sm:$0xff]
  %v288 = vld [vmem:[%s2 + $0x80] sm:$0xf]
  %v289 = vld [vmem:[%s2 + $0x84] sm:$0xff]
  %v290 = vld [vmem:[%s2 + $0x8c] sm:$0xf]
  %v291 = vld [vmem:[%s2 + $0x90] sm:$0xff]
  %v292 = vld [vmem:[%s2 + $0x98] sm:$0xf]
  %v293 = vld [vmem:[%s2 + $0x9c] sm:$0xff]
  %v294 = vld [vmem:[%s2 + $0xa4] sm:$0xf]
  %v295 = vld [vmem:[%s2 + $0xa8] sm:$0xff]
  %v296 = vld [vmem:[%s2 + $0xb0] sm:$0xf]
  %v297 = vld [vmem:[%s2 + $0xb4] sm:$0xff]
  %v298 = vld [vmem:[%s2 + $0xbc] sm:$0xf]
  %v300 = vperm.slane %v65, 0
  %v301 = vperm.slane %v65, 1
  %v302 = vperm.slane %v65, 2
  %v338 = vunpack.c.l.b16 %v267
  %v339 = vunpack.c.h.b16 %v267
  %v340 = vunpack.c.l.b16 %v268
  %v341 = vunpack.c.l.b16 %v269
  %v342 = vunpack.c.h.b16 %v269
  %v343 = vunpack.c.l.b16 %v270
  %v344 = vunpack.c.l.b16 %v271
  %v345 = vunpack.c.h.b16 %v271
  %v346 = vunpack.c.l.b16 %v272
  %v347 = vunpack.c.l.b16 %v273
  %v348 = vunpack.c.h.b16 %v273
  %v349 = vunpack.c.l.b16 %v274
  %v350 = vunpack.c.l.b16 %v275
  %v351 = vunpack.c.h.b16 %v275
  %v352 = vunpack.c.l.b16 %v276
  %v353 = vunpack.c.l.b16 %v277
  %v354 = vunpack.c.h.b16 %v277
  %v355 = vunpack.c.l.b16 %v278
  %v356 = vunpack.c.l.b16 %v279
  %v357 = vunpack.c.h.b16 %v279
  %v358 = vunpack.c.l.b16 %v280
  %v359 = vunpack.c.l.b16 %v281
  %v360 = vunpack.c.h.b16 %v281
  %v361 = vunpack.c.l.b16 %v282
  %v362 = vunpack.c.l.b16 %v283
  %v363 = vunpack.c.h.b16 %v283
  %v364 = vunpack.c.l.b16 %v284
  %v365 = vunpack.c.l.b16 %v285
  %v366 = vunpack.c.h.b16 %v285
  %v367 = vunpack.c.l.b16 %v286
  %v368 = vunpack.c.l.b16 %v287
  %v369 = vunpack.c.h.b16 %v287
  %v370 = vunpack.c.l.b16 %v288
  %v371 = vunpack.c.l.b16 %v289
  %v372 = vunpack.c.h.b16 %v289
  %v373 = vunpack.c.l.b16 %v290
  %v374 = vunpack.c.l.b16 %v291
  %v375 = vunpack.c.h.b16 %v291
  %v376 = vunpack.c.l.b16 %v292
  %v377 = vunpack.c.l.b16 %v293
  %v378 = vunpack.c.h.b16 %v293
  %v379 = vunpack.c.l.b16 %v294
  %v380 = vunpack.c.l.b16 %v295
  %v381 = vunpack.c.h.b16 %v295
  %v382 = vunpack.c.l.b16 %v296
  %v383 = vunpack.c.l.b16 %v297
  %v384 = vunpack.c.h.b16 %v297
  %v385 = vunpack.c.l.b16 %v298
  %v386 = vpack.c.b16 %v341, %v338
  %v387 = vpack.c.b16 %v342, %v339
  %v388 = vpack.c.b16 %v343, %v340
  %v389 = vpack.c.b16 %v347, %v344
  %v390 = vpack.c.b16 %v348, %v345
  %v391 = vpack.c.b16 %v349, %v346
  %v392 = vpack.c.b16 %v353, %v350
  %v393 = vpack.c.b16 %v354, %v351
  %v394 = vpack.c.b16 %v355, %v352
  %v395 = vpack.c.b16 %v359, %v356
  %v396 = vpack.c.b16 %v360, %v357
  %v397 = vpack.c.b16 %v361, %v358
  %v398 = vpack.c.b16 %v365, %v362
  %v399 = vpack.c.b16 %v366, %v363
  %v400 = vpack.c.b16 %v367, %v364
  %v401 = vpack.c.b16 %v371, %v368
  %v402 = vpack.c.b16 %v372, %v369
  %v403 = vpack.c.b16 %v373, %v370
  %v404 = vpack.c.b16 %v377, %v374
  %v405 = vpack.c.b16 %v378, %v375
  %v406 = vpack.c.b16 %v379, %v376
  %v407 = vpack.c.b16 %v383, %v380
  %v408 = vpack.c.b16 %v384, %v381
  %v409 = vpack.c.b16 %v385, %v382
  %434 = vmatpush.bf16.msra.mxu0 %v407
  %435 = vmatpush.bf16.msra.mxu0 %v404
  %436 = vmatpush.bf16.msra.mxu0 %v401
  %437 = vmatpush.bf16.msra.mxu0 %v398
  %438 = vmatpush.bf16.msra.mxu0 %v395
  %439 = vmatpush.bf16.msra.mxu0 %v392
  %440 = vmatpush.bf16.msra.mxu0 %v389
  %441 = vmatpush.bf16.msra.mxu0 %v386
  %442 = vmatmul.bf16.gmra.mxu0 %v265
  %v443 = vpop.f32.mrf.mxu0
  %v444 = vadd.f32 %v300, %v443
  %v445 = vpop.f32.mrf.mxu0
  %v446 = vadd.f32 %v300, %v445
  %447 = vmatmul.bf16.gmra.mxu0 %v266
  %v448 = vpop.f32.mrf.mxu0
  %v449 = vadd.f32 %v300, %v448
  %v450 = vpop.f32.mrf.mxu0
  %451 = vdwg.mxu0
  %452 = vmatpush.bf16.msra.mxu0 %v408
  %453 = vmatpush.bf16.msra.mxu0 %v405
  %454 = vmatpush.bf16.msra.mxu0 %v402
  %455 = vmatpush.bf16.msra.mxu0 %v399
  %456 = vmatpush.bf16.msra.mxu0 %v396
  %457 = vmatpush.bf16.msra.mxu0 %v393
  %458 = vmatpush.bf16.msra.mxu0 %v390
  %459 = vmatpush.bf16.msra.mxu0 %v387
  %460 = vmatmul.bf16.gmra.mxu0 %v265
  %v461 = vpop.f32.mrf.mxu0
  %v462 = vadd.f32 %v301, %v461
  %v463 = vpop.f32.mrf.mxu0
  %v464 = vadd.f32 %v301, %v463
  %465 = vmatmul.bf16.gmra.mxu0 %v266
  %v466 = vpop.f32.mrf.mxu0
  %v467 = vadd.f32 %v301, %v466
  %v468 = vpop.f32.mrf.mxu0
  %469 = vdwg.mxu0
  %470 = vmatpush.bf16.msra.mxu0 %v409
  %471 = vmatpush.bf16.msra.mxu0 %v406
  %472 = vmatpush.bf16.msra.mxu0 %v403
  %473 = vmatpush.bf16.msra.mxu0 %v400
  %474 = vmatpush.bf16.msra.mxu0 %v397
  %475 = vmatpush.bf16.msra.mxu0 %v394
  %476 = vmatpush.bf16.msra.mxu0 %v391
  %477 = vmatpush.bf16.msra.mxu0 %v388
  %478 = vmatmul.bf16.gmra.mxu0 %v265
  %v479 = vpop.f32.mrf.mxu0
  %v480 = vadd.f32 %v302, %v479
  %v481 = vpop.f32.mrf.mxu0
  %v482 = vadd.f32 %v302, %v481
  %483 = vmatmul.bf16.gmra.mxu0 %v266
  %v484 = vpop.f32.mrf.mxu0
  %v485 = vadd.f32 %v302, %v484
  %v486 = vpop.f32.mrf.mxu0
  %487 = vdwg.mxu0
  %v488 = vsel %vm93, %v480, -inf
  %v489 = vmax.f32 %v444, %v488
  %v490 = vmax.f32 %v489, %v462
  %491 = vmax.xlane.f32.xlu0 %v490
  %v492 = vpop.xlane.xlu0 %491
  %v493 = vsel %vm93, %v482, -inf
  %v494 = vmax.f32 %v446, %v493
  %v495 = vmax.f32 %v494, %v464
  %496 = vmax.xlane.f32.xlu0 %v495
  %v497 = vpop.xlane.xlu0 %496
  %v498 = vsel %vm93, %v485, -inf
  %v499 = vmax.f32 %v449, %v498
  %v500 = vmax.f32 %v499, %v467
  %501 = vmax.xlane.f32.xlu0 %v500
  %v502 = vpop.xlane.xlu0 %501
  %v503 = vsub.f32 %v444, %v492
  %v504 = vsub.f32 %v462, %v492
  %v505 = vsub.f32 %v480, %v492
  %v506 = vsub.f32 %v446, %v497
  %v507 = vsub.f32 %v464, %v497
  %v508 = vsub.f32 %v482, %v497
  %v509 = vsub.f32 %v449, %v502
  %v510 = vsub.f32 %v467, %v502
  %v511 = vsub.f32 %v485, %v502
  %v512 = vmul.f32 %v503, 1.442695
  %v513 = vpow.pop %v512
  %v514 = vmul.f32 %v504, 1.442695
  %v515 = vpow.pop %v514
  %v516 = vmul.f32 %v505, 1.442695
  %v517 = vpow.pop %v516
  %v518 = vmul.f32 %v506, 1.442695
  %v519 = vpow.pop %v518
  %v520 = vmul.f32 %v507, 1.442695
  %v521 = vpow.pop %v520
  %v522 = vmul.f32 %v508, 1.442695
  %v523 = vpow.pop %v522
  %v524 = vmul.f32 %v509, 1.442695
  %v525 = vpow.pop %v524
  %v526 = vmul.f32 %v510, 1.442695
  %v527 = vpow.pop %v526
  %v528 = vmul.f32 %v511, 1.442695
  %v529 = vpow.pop %v528
  %v530 = vlaneseq
  %v531 = vshrl.u32 %v530, 7
  %v532 = vadd.s32 %v531, 8
  %v533 = vadd.s32 %v531, 16
  %v534 = vadd.s32 %v531, 24
  %v535 = vadd.s32 %v531, 32
  %v536 = vadd.s32 %v531, 40
  %v537 = vadd.s32 %v531, 48
  %v538 = vadd.s32 %v531, 56
  %v539 = vadd.s32 %v531, 64
  %v540 = vadd.s32 %v531, 72
  %v541 = vadd.s32 %v531, 80
  %v542 = vadd.s32 %v531, 88
  %v543 = vadd.s32 %v531, 96
  %v544 = vadd.s32 %v531, 104
  %v545 = vadd.s32 %v531, 112
  %v546 = vadd.s32 %v531, 120
  %v547 = vadd.s32 %v531, 128
  %v548 = vadd.s32 %v531, 136
  %v549 = vadd.s32 %v531, 144
  %v550 = vadd.s32 %v531, 152
  %v551 = vadd.s32 %v531, 160
  %v552 = vadd.s32 %v531, 168
  %v553 = vadd.s32 %v531, 176
  %v554 = vadd.s32 %v531, 184
  %v555 = vadd.s32 %v531, 192
  %v556 = vadd.s32 %v531, 200
  %v557 = vadd.s32 %v531, 208
  %v558 = vadd.s32 %v531, 216
  %v559 = vadd.s32 %v531, 224
  %v560 = vadd.s32 %v531, 232
  %v561 = vadd.s32 %v531, 240
  %v562 = vadd.s32 %v531, 248
  %v563 = vadd.s32 %v531, 256
  %v564 = vadd.s32 %v531, 264
  %v565 = vadd.s32 %v531, 272
  %v566 = vadd.s32 %v531, 280
  %v567 = vadd.s32 %v531, 288
  %v568 = vadd.s32 %v531, 296
  %v569 = vadd.s32 %v531, 304
  %v570 = vadd.s32 %v531, 312
  %v571 = vshra.s32 %v531, 5
  %v572 = vshra.s32 %v532, 5
  %v573 = vshra.s32 %v533, 5
  %v574 = vshra.s32 %v534, 5
  %v575 = vshra.s32 %v535, 5
  %v576 = vshra.s32 %v536, 5
  %v577 = vshra.s32 %v537, 5
  %v578 = vshra.s32 %v538, 5
  %v579 = vshra.s32 %v539, 5
  %v580 = vshra.s32 %v540, 5
  %v581 = vshra.s32 %v541, 5
  %v582 = vshra.s32 %v542, 5
  %v583 = vshra.s32 %v543, 5
  %v584 = vshra.s32 %v544, 5
  %v585 = vshra.s32 %v545, 5
  %v586 = vshra.s32 %v546, 5
  %v587 = vshra.s32 %v547, 5
  %v588 = vshra.s32 %v548, 5
  %v589 = vshra.s32 %v549, 5
  %v590 = vshra.s32 %v550, 5
  %v591 = vshra.s32 %v551, 5
  %v592 = vshra.s32 %v552, 5
  %v593 = vshra.s32 %v553, 5
  %v594 = vshra.s32 %v554, 5
  %v595 = vshra.s32 %v555, 5
  %v596 = vshra.s32 %v556, 5
  %v597 = vshra.s32 %v557, 5
  %v598 = vshra.s32 %v558, 5
  %v599 = vshra.s32 %v559, 5
  %v600 = vshra.s32 %v560, 5
  %v601 = vshra.s32 %v561, 5
  %v602 = vshra.s32 %v562, 5
  %v603 = vshra.s32 %v563, 5
  %v604 = vshra.s32 %v564, 5
  %v605 = vshra.s32 %v565, 5
  %v606 = vshra.s32 %v566, 5
  %v607 = vshra.s32 %v567, 5
  %v608 = vshra.s32 %v568, 5
  %v609 = vshra.s32 %v569, 5
  %v610 = vshra.s32 %v570, 5
  %v611 = vlaneseq
  %v612 = vand.u32 %v611, 127
  %v613 = vadd.s32 %v612, 128
  %v614 = vadd.s32 %v612, 256
  %v615 = vshra.s32 %v612, 5
  %v616 = vshra.s32 %v613, 5
  %v617 = vshra.s32 %v614, 5
  %vm618 = vcmp.eq.s32.totalorder %v571, %v615
  %vm619 = vcmp.eq.s32.totalorder %v571, %v616
  %vm620 = vcmp.eq.s32.totalorder %v571, %v617
  %vm621 = vcmp.eq.s32.totalorder %v572, %v615
  %vm622 = vcmp.eq.s32.totalorder %v572, %v616
  %vm623 = vcmp.eq.s32.totalorder %v572, %v617
  %vm624 = vcmp.eq.s32.totalorder %v573, %v615
  %vm625 = vcmp.eq.s32.totalorder %v573, %v616
  %vm626 = vcmp.eq.s32.totalorder %v573, %v617
  %vm627 = vcmp.eq.s32.totalorder %v574, %v615
  %vm628 = vcmp.eq.s32.totalorder %v574, %v616
  %vm629 = vcmp.eq.s32.totalorder %v574, %v617
  %vm630 = vcmp.eq.s32.totalorder %v575, %v615
  %vm631 = vcmp.eq.s32.totalorder %v575, %v616
  %vm632 = vcmp.eq.s32.totalorder %v575, %v617
  %vm633 = vcmp.eq.s32.totalorder %v576, %v615
  %vm634 = vcmp.eq.s32.totalorder %v576, %v616
  %vm635 = vcmp.eq.s32.totalorder %v576, %v617
  %vm636 = vcmp.eq.s32.totalorder %v577, %v615
  %vm637 = vcmp.eq.s32.totalorder %v577, %v616
  %vm638 = vcmp.eq.s32.totalorder %v577, %v617
  %vm639 = vcmp.eq.s32.totalorder %v578, %v615
  %vm640 = vcmp.eq.s32.totalorder %v578, %v616
  %vm641 = vcmp.eq.s32.totalorder %v578, %v617
  %vm642 = vcmp.eq.s32.totalorder %v579, %v615
  %vm643 = vcmp.eq.s32.totalorder %v579, %v616
  %vm644 = vcmp.eq.s32.totalorder %v579, %v617
  %vm645 = vcmp.eq.s32.totalorder %v580, %v615
  %vm646 = vcmp.eq.s32.totalorder %v580, %v616
  %vm647 = vcmp.eq.s32.totalorder %v580, %v617
  %vm648 = vcmp.eq.s32.totalorder %v581, %v615
  %vm649 = vcmp.eq.s32.totalorder %v581, %v616
  %vm650 = vcmp.eq.s32.totalorder %v581, %v617
  %vm651 = vcmp.eq.s32.totalorder %v582, %v615
  %vm652 = vcmp.eq.s32.totalorder %v582, %v616
  %vm653 = vcmp.eq.s32.totalorder %v582, %v617
  %vm654 = vcmp.eq.s32.totalorder %v583, %v615
  %vm655 = vcmp.eq.s32.totalorder %v583, %v616
  %vm656 = vcmp.eq.s32.totalorder %v583, %v617
  %vm657 = vcmp.eq.s32.totalorder %v584, %v615
  %vm658 = vcmp.eq.s32.totalorder %v584, %v616
  %vm659 = vcmp.eq.s32.totalorder %v584, %v617
  %vm660 = vcmp.eq.s32.totalorder %v585, %v615
  %vm661 = vcmp.eq.s32.totalorder %v585, %v616
  %vm662 = vcmp.eq.s32.totalorder %v585, %v617
  %vm663 = vcmp.eq.s32.totalorder %v586, %v615
  %vm664 = vcmp.eq.s32.totalorder %v586, %v616
  %vm665 = vcmp.eq.s32.totalorder %v586, %v617
  %vm666 = vcmp.eq.s32.totalorder %v587, %v615
  %vm667 = vcmp.eq.s32.totalorder %v587, %v616
  %vm668 = vcmp.eq.s32.totalorder %v587, %v617
  %vm669 = vcmp.eq.s32.totalorder %v588, %v615
  %vm670 = vcmp.eq.s32.totalorder %v588, %v616
  %vm671 = vcmp.eq.s32.totalorder %v588, %v617
  %vm672 = vcmp.eq.s32.totalorder %v589, %v615
  %vm673 = vcmp.eq.s32.totalorder %v589, %v616
  %vm674 = vcmp.eq.s32.totalorder %v589, %v617
  %vm675 = vcmp.eq.s32.totalorder %v590, %v615
  %vm676 = vcmp.eq.s32.totalorder %v590, %v616
  %vm677 = vcmp.eq.s32.totalorder %v590, %v617
  %vm678 = vcmp.eq.s32.totalorder %v591, %v615
  %vm679 = vcmp.eq.s32.totalorder %v591, %v616
  %vm680 = vcmp.eq.s32.totalorder %v591, %v617
  %vm681 = vcmp.eq.s32.totalorder %v592, %v615
  %vm682 = vcmp.eq.s32.totalorder %v592, %v616
  %vm683 = vcmp.eq.s32.totalorder %v592, %v617
  %vm684 = vcmp.eq.s32.totalorder %v593, %v615
  %vm685 = vcmp.eq.s32.totalorder %v593, %v616
  %vm686 = vcmp.eq.s32.totalorder %v593, %v617
  %vm687 = vcmp.eq.s32.totalorder %v594, %v615
  %vm688 = vcmp.eq.s32.totalorder %v594, %v616
  %vm689 = vcmp.eq.s32.totalorder %v594, %v617
  %vm690 = vcmp.eq.s32.totalorder %v595, %v615
  %vm691 = vcmp.eq.s32.totalorder %v595, %v616
  %vm692 = vcmp.eq.s32.totalorder %v595, %v617
  %vm693 = vcmp.eq.s32.totalorder %v596, %v615
  %vm694 = vcmp.eq.s32.totalorder %v596, %v616
  %vm695 = vcmp.eq.s32.totalorder %v596, %v617
  %vm696 = vcmp.eq.s32.totalorder %v597, %v615
  %vm697 = vcmp.eq.s32.totalorder %v597, %v616
  %vm698 = vcmp.eq.s32.totalorder %v597, %v617
  %vm699 = vcmp.eq.s32.totalorder %v598, %v615
  %vm700 = vcmp.eq.s32.totalorder %v598, %v616
  %vm701 = vcmp.eq.s32.totalorder %v598, %v617
  %vm702 = vcmp.eq.s32.totalorder %v599, %v615
  %vm703 = vcmp.eq.s32.totalorder %v599, %v616
  %vm704 = vcmp.eq.s32.totalorder %v599, %v617
  %vm705 = vcmp.eq.s32.totalorder %v600, %v615
  %vm706 = vcmp.eq.s32.totalorder %v600, %v616
  %vm707 = vcmp.eq.s32.totalorder %v600, %v617
  %vm708 = vcmp.eq.s32.totalorder %v601, %v615
  %vm709 = vcmp.eq.s32.totalorder %v601, %v616
  %vm710 = vcmp.eq.s32.totalorder %v601, %v617
  %vm711 = vcmp.eq.s32.totalorder %v602, %v615
  %vm712 = vcmp.eq.s32.totalorder %v602, %v616
  %vm713 = vcmp.eq.s32.totalorder %v602, %v617
  %vm714 = vcmp.eq.s32.totalorder %v603, %v615
  %vm715 = vcmp.eq.s32.totalorder %v603, %v616
  %vm716 = vcmp.eq.s32.totalorder %v603, %v617
  %vm717 = vcmp.eq.s32.totalorder %v604, %v615
  %vm718 = vcmp.eq.s32.totalorder %v604, %v616
  %vm719 = vcmp.eq.s32.totalorder %v604, %v617
  %vm720 = vcmp.eq.s32.totalorder %v605, %v615
  %vm721 = vcmp.eq.s32.totalorder %v605, %v616
  %vm722 = vcmp.eq.s32.totalorder %v605, %v617
  %vm723 = vcmp.eq.s32.totalorder %v606, %v615
  %vm724 = vcmp.eq.s32.totalorder %v606, %v616
  %vm725 = vcmp.eq.s32.totalorder %v606, %v617
  %vm726 = vcmp.eq.s32.totalorder %v607, %v615
  %vm727 = vcmp.eq.s32.totalorder %v607, %v616
  %vm728 = vcmp.eq.s32.totalorder %v607, %v617
  %vm729 = vcmp.eq.s32.totalorder %v608, %v615
  %vm730 = vcmp.eq.s32.totalorder %v608, %v616
  %vm731 = vcmp.eq.s32.totalorder %v608, %v617
  %vm732 = vcmp.eq.s32.totalorder %v609, %v615
  %vm733 = vcmp.eq.s32.totalorder %v609, %v616
  %vm734 = vcmp.eq.s32.totalorder %v609, %v617
  %vm735 = vcmp.eq.s32.totalorder %v610, %v615
  %vm736 = vcmp.eq.s32.totalorder %v610, %v616
  %vm737 = vcmp.eq.s32.totalorder %v610, %v617
  %v738 = vsel %vm618, 1.0, 0.0
  %v739 = vsel %vm619, 1.0, 0.0
  %v740 = vsel %vm620, 1.0, 0.0
  %v741 = vsel %vm621, 1.0, 0.0
  %v742 = vsel %vm622, 1.0, 0.0
  %v743 = vsel %vm623, 1.0, 0.0
  %v744 = vsel %vm624, 1.0, 0.0
  %v745 = vsel %vm625, 1.0, 0.0
  %v746 = vsel %vm626, 1.0, 0.0
  %v747 = vsel %vm627, 1.0, 0.0
  %v748 = vsel %vm628, 1.0, 0.0
  %v749 = vsel %vm629, 1.0, 0.0
  %v750 = vsel %vm630, 1.0, 0.0
  %v751 = vsel %vm631, 1.0, 0.0
  %v752 = vsel %vm632, 1.0, 0.0
  %v753 = vsel %vm633, 1.0, 0.0
  %v754 = vsel %vm634, 1.0, 0.0
  %v755 = vsel %vm635, 1.0, 0.0
  %v756 = vsel %vm636, 1.0, 0.0
  %v757 = vsel %vm637, 1.0, 0.0
  %v758 = vsel %vm638, 1.0, 0.0
  %v759 = vsel %vm639, 1.0, 0.0
  %v760 = vsel %vm640, 1.0, 0.0
  %v761 = vsel %vm641, 1.0, 0.0
  %v762 = vsel %vm642, 1.0, 0.0
  %v763 = vsel %vm643, 1.0, 0.0
  %v764 = vsel %vm644, 1.0, 0.0
  %v765 = vsel %vm645, 1.0, 0.0
  %v766 = vsel %vm646, 1.0, 0.0
  %v767 = vsel %vm647, 1.0, 0.0
  %v768 = vsel %vm648, 1.0, 0.0
  %v769 = vsel %vm649, 1.0, 0.0
  %v770 = vsel %vm650, 1.0, 0.0
  %v771 = vsel %vm651, 1.0, 0.0
  %v772 = vsel %vm652, 1.0, 0.0
  %v773 = vsel %vm653, 1.0, 0.0
  %v774 = vsel %vm654, 1.0, 0.0
  %v775 = vsel %vm655, 1.0, 0.0
  %v776 = vsel %vm656, 1.0, 0.0
  %v777 = vsel %vm657, 1.0, 0.0
  %v778 = vsel %vm658, 1.0, 0.0
  %v779 = vsel %vm659, 1.0, 0.0
  %v780 = vsel %vm660, 1.0, 0.0
  %v781 = vsel %vm661, 1.0, 0.0
  %v782 = vsel %vm662, 1.0, 0.0
  %v783 = vsel %vm663, 1.0, 0.0
  %v784 = vsel %vm664, 1.0, 0.0
  %v785 = vsel %vm665, 1.0, 0.0
  %v786 = vsel %vm666, 1.0, 0.0
  %v787 = vsel %vm667, 1.0, 0.0
  %v788 = vsel %vm668, 1.0, 0.0
  %v789 = vsel %vm669, 1.0, 0.0
  %v790 = vsel %vm670, 1.0, 0.0
  %v791 = vsel %vm671, 1.0, 0.0
  %v792 = vsel %vm672, 1.0, 0.0
  %v793 = vsel %vm673, 1.0, 0.0
  %v794 = vsel %vm674, 1.0, 0.0
  %v795 = vsel %vm675, 1.0, 0.0
  %v796 = vsel %vm676, 1.0, 0.0
  %v797 = vsel %vm677, 1.0, 0.0
  %v798 = vsel %vm678, 1.0, 0.0
  %v799 = vsel %vm679, 1.0, 0.0
  %v800 = vsel %vm680, 1.0, 0.0
  %v801 = vsel %vm681, 1.0, 0.0
  %v802 = vsel %vm682, 1.0, 0.0
  %v803 = vsel %vm683, 1.0, 0.0
  %v804 = vsel %vm684, 1.0, 0.0
  %v805 = vsel %vm685, 1.0, 0.0
  %v806 = vsel %vm686, 1.0, 0.0
  %v807 = vsel %vm687, 1.0, 0.0
  %v808 = vsel %vm688, 1.0, 0.0
  %v809 = vsel %vm689, 1.0, 0.0
  %v810 = vsel %vm690, 1.0, 0.0
  %v811 = vsel %vm691, 1.0, 0.0
  %v812 = vsel %vm692, 1.0, 0.0
  %v813 = vsel %vm693, 1.0, 0.0
  %v814 = vsel %vm694, 1.0, 0.0
  %v815 = vsel %vm695, 1.0, 0.0
  %v816 = vsel %vm696, 1.0, 0.0
  %v817 = vsel %vm697, 1.0, 0.0
  %v818 = vsel %vm698, 1.0, 0.0
  %v819 = vsel %vm699, 1.0, 0.0
  %v820 = vsel %vm700, 1.0, 0.0
  %v821 = vsel %vm701, 1.0, 0.0
  %v822 = vsel %vm702, 1.0, 0.0
  %v823 = vsel %vm703, 1.0, 0.0
  %v824 = vsel %vm704, 1.0, 0.0
  %v825 = vsel %vm705, 1.0, 0.0
  %v826 = vsel %vm706, 1.0, 0.0
  %v827 = vsel %vm707, 1.0, 0.0
  %v828 = vsel %vm708, 1.0, 0.0
  %v829 = vsel %vm709, 1.0, 0.0
  %v830 = vsel %vm710, 1.0, 0.0
  %v831 = vsel %vm711, 1.0, 0.0
  %v832 = vsel %vm712, 1.0, 0.0
  %v833 = vsel %vm713, 1.0, 0.0
  %v834 = vsel %vm714, 1.0, 0.0
  %v835 = vsel %vm715, 1.0, 0.0
  %v836 = vsel %vm716, 1.0, 0.0
  %v837 = vsel %vm717, 1.0, 0.0
  %v838 = vsel %vm718, 1.0, 0.0
  %v839 = vsel %vm719, 1.0, 0.0
  %v840 = vsel %vm720, 1.0, 0.0
  %v841 = vsel %vm721, 1.0, 0.0
  %v842 = vsel %vm722, 1.0, 0.0
  %v843 = vsel %vm723, 1.0, 0.0
  %v844 = vsel %vm724, 1.0, 0.0
  %v845 = vsel %vm725, 1.0, 0.0
  %v846 = vsel %vm726, 1.0, 0.0
  %v847 = vsel %vm727, 1.0, 0.0
  %v848 = vsel %vm728, 1.0, 0.0
  %v849 = vsel %vm729, 1.0, 0.0
  %v850 = vsel %vm730, 1.0, 0.0
  %v851 = vsel %vm731, 1.0, 0.0
  %v852 = vsel %vm732, 1.0, 0.0
  %v853 = vsel %vm733, 1.0, 0.0
  %v854 = vsel %vm734, 1.0, 0.0
  %v855 = vsel %vm735, 1.0, 0.0
  %v856 = vsel %vm736, 1.0, 0.0
  %v857 = vsel %vm737, 1.0, 0.0
  %v859 = vsel %vm93, %v517, 0
  %v862 = vsel %vm93, %v523, 0
  %v865 = vsel %vm93, %v529, 0
  %867 = vmatpush.msra.mxu0 %v783
  %868 = vmatpush.msra.mxu0 %v780
  %869 = vmatpush.msra.mxu0 %v777
  %870 = vmatpush.msra.mxu0 %v774
  %871 = vmatpush.msra.mxu0 %v771
  %872 = vmatpush.msra.mxu0 %v768
  %873 = vmatpush.msra.mxu0 %v765
  %874 = vmatpush.msra.mxu0 %v762
  %875 = vmatpush.msra.mxu0 %v759
  %876 = vmatpush.msra.mxu0 %v756
  %877 = vmatpush.msra.mxu0 %v753
  %878 = vmatpush.msra.mxu0 %v750
  %879 = vmatpush.msra.mxu0 %v747
  %880 = vmatpush.msra.mxu0 %v744
  %881 = vmatpush.msra.mxu0 %v741
  %882 = vmatpush.msra.mxu0 %v738
  %883 = vmatmul.f32.gmra.mxu0 %v513
  %v884 = vpop.f32.mrf.mxu0
  %v885 = vadd.f32 0.0, %v884
  %886 = vmatmul.f32.gmra.mxu0 %v519
  %v887 = vpop.f32.mrf.mxu0
  %v888 = vadd.f32 0.0, %v887
  %889 = vmatmul.f32.gmra.mxu0 %v525
  %v890 = vpop.f32.mrf.mxu0
  %v891 = vadd.f32 0.0, %v890
  %892 = vdwg.mxu0
  %893 = vmatpush.msra.mxu0 %v831
  %894 = vmatpush.msra.mxu0 %v828
  %895 = vmatpush.msra.mxu0 %v825
  %896 = vmatpush.msra.mxu0 %v822
  %897 = vmatpush.msra.mxu0 %v819
  %898 = vmatpush.msra.mxu0 %v816
  %899 = vmatpush.msra.mxu0 %v813
  %900 = vmatpush.msra.mxu0 %v810
  %901 = vmatpush.msra.mxu0 %v807
  %902 = vmatpush.msra.mxu0 %v804
  %903 = vmatpush.msra.mxu0 %v801
  %904 = vmatpush.msra.mxu0 %v798
  %905 = vmatpush.msra.mxu0 %v795
  %906 = vmatpush.msra.mxu0 %v792
  %907 = vmatpush.msra.mxu0 %v789
  %908 = vmatpush.msra.mxu0 %v786
  %909 = vmatmul.f32.gmra.mxu0 %v515
  %v910 = vpop.f32.mrf.mxu0
  %v911 = vadd.f32 %v885, %v910
  %912 = vmatmul.f32.gmra.mxu0 %v521
  %v913 = vpop.f32.mrf.mxu0
  %v914 = vadd.f32 %v888, %v913
  %915 = vmatmul.f32.gmra.mxu0 %v527
  %v916 = vpop.f32.mrf.mxu0
  %v917 = vadd.f32 %v891, %v916
  %918 = vdwg.mxu0
  %919 = vmatpush.msra.mxu0 0.0
  %920 = vmatpush.msra.mxu0 0.0
  %921 = vmatpush.msra.mxu0 0.0
  %922 = vmatpush.msra.mxu0 0.0
  %923 = vmatpush.msra.mxu0 0.0
  %924 = vmatpush.msra.mxu0 0.0
  %925 = vmatpush.msra.mxu0 0.0
  %926 = vmatpush.msra.mxu0 0.0
  %927 = vmatpush.msra.mxu0 %v855
  %928 = vmatpush.msra.mxu0 %v852
  %929 = vmatpush.msra.mxu0 %v849
  %930 = vmatpush.msra.mxu0 %v846
  %931 = vmatpush.msra.mxu0 %v843
  %932 = vmatpush.msra.mxu0 %v840
  %933 = vmatpush.msra.mxu0 %v837
  %934 = vmatpush.msra.mxu0 %v834
  %935 = vmatmul.f32.gmra.mxu0 %v859
  %v936 = vpop.f32.mrf.mxu0
  %v937 = vadd.f32 %v911, %v936
  %938 = vmatmul.f32.gmra.mxu0 %v862
  %v939 = vpop.f32.mrf.mxu0
  %v940 = vadd.f32 %v914, %v939
  %941 = vmatmul.f32.gmra.mxu0 %v865
  %v942 = vpop.f32.mrf.mxu0
  %v943 = vadd.f32 %v917, %v942
  %944 = vdwg.mxu0
  %945 = vmatpush.msra.mxu0 %v784
  %946 = vmatpush.msra.mxu0 %v781
  %947 = vmatpush.msra.mxu0 %v778
  %948 = vmatpush.msra.mxu0 %v775
  %949 = vmatpush.msra.mxu0 %v772
  %950 = vmatpush.msra.mxu0 %v769
  %951 = vmatpush.msra.mxu0 %v766
  %952 = vmatpush.msra.mxu0 %v763
  %953 = vmatpush.msra.mxu0 %v760
  %954 = vmatpush.msra.mxu0 %v757
  %955 = vmatpush.msra.mxu0 %v754
  %956 = vmatpush.msra.mxu0 %v751
  %957 = vmatpush.msra.mxu0 %v748
  %958 = vmatpush.msra.mxu0 %v745
  %959 = vmatpush.msra.mxu0 %v742
  %960 = vmatpush.msra.mxu0 %v739
  %961 = vmatmul.f32.gmra.mxu0 %v513
  %v962 = vpop.f32.mrf.mxu0
  %v963 = vadd.f32 0.0, %v962
  %964 = vmatmul.f32.gmra.mxu0 %v519
  %v965 = vpop.f32.mrf.mxu0
  %v966 = vadd.f32 0.0, %v965
  %967 = vmatmul.f32.gmra.mxu0 %v525
  %v968 = vpop.f32.mrf.mxu0
  %v969 = vadd.f32 0.0, %v968
  %970 = vdwg.mxu0
  %971 = vmatpush.msra.mxu0 %v832
  %972 = vmatpush.msra.mxu0 %v829
  %973 = vmatpush.msra.mxu0 %v826
  %974 = vmatpush.msra.mxu0 %v823
  %975 = vmatpush.msra.mxu0 %v820
  %976 = vmatpush.msra.mxu0 %v817
  %977 = vmatpush.msra.mxu0 %v814
  %978 = vmatpush.msra.mxu0 %v811
  %979 = vmatpush.msra.mxu0 %v808
  %980 = vmatpush.msra.mxu0 %v805
  %981 = vmatpush.msra.mxu0 %v802
  %982 = vmatpush.msra.mxu0 %v799
  %983 = vmatpush.msra.mxu0 %v796
  %984 = vmatpush.msra.mxu0 %v793
  %985 = vmatpush.msra.mxu0 %v790
  %986 = vmatpush.msra.mxu0 %v787
  %987 = vmatmul.f32.gmra.mxu0 %v515
  %v988 = vpop.f32.mrf.mxu0
  %v989 = vadd.f32 %v963, %v988
  %990 = vmatmul.f32.gmra.mxu0 %v521
  %v991 = vpop.f32.mrf.mxu0
  %v992 = vadd.f32 %v966, %v991
  %993 = vmatmul.f32.gmra.mxu0 %v527
  %v994 = vpop.f32.mrf.mxu0
  %v995 = vadd.f32 %v969, %v994
  %996 = vdwg.mxu0
  %997 = vmatpush.msra.mxu0 0.0
  %998 = vmatpush.msra.mxu0 0.0
  %999 = vmatpush.msra.mxu0 0.0
  %1000 = vmatpush.msra.mxu0 0.0
  %1001 = vmatpush.msra.mxu0 0.0
  %1002 = vmatpush.msra.mxu0 0.0
  %1003 = vmatpush.msra.mxu0 0.0
  %1004 = vmatpush.msra.mxu0 0.0
  %1005 = vmatpush.msra.mxu0 %v856
  %1006 = vmatpush.msra.mxu0 %v853
  %1007 = vmatpush.msra.mxu0 %v850
  %1008 = vmatpush.msra.mxu0 %v847
  %1009 = vmatpush.msra.mxu0 %v844
  %1010 = vmatpush.msra.mxu0 %v841
  %1011 = vmatpush.msra.mxu0 %v838
  %1012 = vmatpush.msra.mxu0 %v835
  %1013 = vmatmul.f32.gmra.mxu0 %v859
  %v1014 = vpop.f32.mrf.mxu0
  %v1015 = vadd.f32 %v989, %v1014
  %1016 = vmatmul.f32.gmra.mxu0 %v862
  %v1017 = vpop.f32.mrf.mxu0
  %v1018 = vadd.f32 %v992, %v1017
  %1019 = vmatmul.f32.gmra.mxu0 %v865
  %v1020 = vpop.f32.mrf.mxu0
  %v1021 = vadd.f32 %v995, %v1020
  %1022 = vdwg.mxu0
  %1023 = vmatpush.msra.mxu0 %v785
  %1024 = vmatpush.msra.mxu0 %v782
  %1025 = vmatpush.msra.mxu0 %v779
  %1026 = vmatpush.msra.mxu0 %v776
  %1027 = vmatpush.msra.mxu0 %v773
  %1028 = vmatpush.msra.mxu0 %v770
  %1029 = vmatpush.msra.mxu0 %v767
  %1030 = vmatpush.msra.mxu0 %v764
  %1031 = vmatpush.msra.mxu0 %v761
  %1032 = vmatpush.msra.mxu0 %v758
  %1033 = vmatpush.msra.mxu0 %v755
  %1034 = vmatpush.msra.mxu0 %v752
  %1035 = vmatpush.msra.mxu0 %v749
  %1036 = vmatpush.msra.mxu0 %v746
  %1037 = vmatpush.msra.mxu0 %v743
  %1038 = vmatpush.msra.mxu0 %v740
  %1039 = vmatmul.f32.gmra.mxu0 %v513
  %v1040 = vpop.f32.mrf.mxu0
  %v1041 = vadd.f32 0.0, %v1040
  %1042 = vmatmul.f32.gmra.mxu0 %v519
  %v1043 = vpop.f32.mrf.mxu0
  %v1044 = vadd.f32 0.0, %v1043
  %1045 = vmatmul.f32.gmra.mxu0 %v525
  %v1046 = vpop.f32.mrf.mxu0
  %v1047 = vadd.f32 0.0, %v1046
  %1048 = vdwg.mxu0
  %1049 = vmatpush.msra.mxu0 %v833
  %1050 = vmatpush.msra.mxu0 %v830
  %1051 = vmatpush.msra.mxu0 %v827
  %1052 = vmatpush.msra.mxu0 %v824
  %1053 = vmatpush.msra.mxu0 %v821
  %1054 = vmatpush.msra.mxu0 %v818
  %1055 = vmatpush.msra.mxu0 %v815
  %1056 = vmatpush.msra.mxu0 %v812
  %1057 = vmatpush.msra.mxu0 %v809
  %1058 = vmatpush.msra.mxu0 %v806
  %1059 = vmatpush.msra.mxu0 %v803
  %1060 = vmatpush.msra.mxu0 %v800
  %1061 = vmatpush.msra.mxu0 %v797
  %1062 = vmatpush.msra.mxu0 %v794
  %1063 = vmatpush.msra.mxu0 %v791
  %1064 = vmatpush.msra.mxu0 %v788
  %1065 = vmatmul.f32.gmra.mxu0 %v515
  %v1066 = vpop.f32.mrf.mxu0
  %v1067 = vadd.f32 %v1041, %v1066
  %1068 = vmatmul.f32.gmra.mxu0 %v521
  %v1069 = vpop.f32.mrf.mxu0
  %v1070 = vadd.f32 %v1044, %v1069
  %1071 = vmatmul.f32.gmra.mxu0 %v527
  %v1072 = vpop.f32.mrf.mxu0
  %v1073 = vadd.f32 %v1047, %v1072
  %1074 = vdwg.mxu0
  %1075 = vmatpush.msra.mxu0 0.0
  %1076 = vmatpush.msra.mxu0 0.0
  %1077 = vmatpush.msra.mxu0 0.0
  %1078 = vmatpush.msra.mxu0 0.0
  %1079 = vmatpush.msra.mxu0 0.0
  %1080 = vmatpush.msra.mxu0 0.0
  %1081 = vmatpush.msra.mxu0 0.0
  %1082 = vmatpush.msra.mxu0 0.0
  %1083 = vmatpush.msra.mxu0 %v857
  %1084 = vmatpush.msra.mxu0 %v854
  %1085 = vmatpush.msra.mxu0 %v851
  %1086 = vmatpush.msra.mxu0 %v848
  %1087 = vmatpush.msra.mxu0 %v845
  %1088 = vmatpush.msra.mxu0 %v842
  %1089 = vmatpush.msra.mxu0 %v839
  %1090 = vmatpush.msra.mxu0 %v836
  %1091 = vmatmul.f32.gmra.mxu0 %v859
  %v1092 = vpop.f32.mrf.mxu0
  %v1093 = vadd.f32 %v1067, %v1092
  %1094 = vmatmul.f32.gmra.mxu0 %v862
  %v1095 = vpop.f32.mrf.mxu0
  %v1096 = vadd.f32 %v1070, %v1095
  %1097 = vmatmul.f32.gmra.mxu0 %v865
  %v1098 = vpop.f32.mrf.mxu0
  %v1099 = vadd.f32 %v1073, %v1098
  %1100 = vdwg.mxu0
  %v1101 = vmax.f32 %v937, 1e-30
  %v1102 = vmax.f32 %v1015, 1e-30
  %v1103 = vmax.f32 %v1093, 1e-30
  %v1104 = vmax.f32 %v940, 1e-30
  %v1105 = vmax.f32 %v1018, 1e-30
  %v1106 = vmax.f32 %v1096, 1e-30
  %v1107 = vmax.f32 %v943, 1e-30
  %v1108 = vmax.f32 %v1021, 1e-30
  %v1109 = vmax.f32 %v1099, 1e-30
  %v1110 = vrcp.pop %v1101
  %v1111 = vrcp.pop %v1102
  %v1112 = vrcp.pop %v1103
  %v1113 = vrcp.pop %v1104
  %v1114 = vrcp.pop %v1105
  %v1115 = vrcp.pop %v1106
  %v1116 = vrcp.pop %v1107
  %v1117 = vrcp.pop %v1108
  %v1118 = vrcp.pop %v1109
  %v1119 = vmul.f32 %v1101, %v1110
  %v1120 = vmul.f32 %v1102, %v1111
  %v1121 = vmul.f32 %v1103, %v1112
  %v1122 = vmul.f32 %v1104, %v1113
  %v1123 = vmul.f32 %v1105, %v1114
  %v1124 = vmul.f32 %v1106, %v1115
  %v1125 = vmul.f32 %v1107, %v1116
  %v1126 = vmul.f32 %v1108, %v1117
  %v1127 = vmul.f32 %v1109, %v1118
  %v1128 = vsub.f32 2.0, %v1119
  %v1129 = vsub.f32 2.0, %v1120
  %v1130 = vsub.f32 2.0, %v1121
  %v1131 = vsub.f32 2.0, %v1122
  %v1132 = vsub.f32 2.0, %v1123
  %v1133 = vsub.f32 2.0, %v1124
  %v1134 = vsub.f32 2.0, %v1125
  %v1135 = vsub.f32 2.0, %v1126
  %v1136 = vsub.f32 2.0, %v1127
  %v1137 = vmul.f32 %v1110, %v1128
  %v1138 = vmul.f32 %v1111, %v1129
  %v1139 = vmul.f32 %v1112, %v1130
  %v1140 = vmul.f32 %v1113, %v1131
  %v1141 = vmul.f32 %v1114, %v1132
  %v1142 = vmul.f32 %v1115, %v1133
  %v1143 = vmul.f32 %v1116, %v1134
  %v1144 = vmul.f32 %v1117, %v1135
  %v1145 = vmul.f32 %v1118, %v1136
  %v1146 = vmul.f32 %v513, %v1137
  %v1147 = vmul.f32 %v515, %v1138
  %v1148 = vmul.f32 %v517, %v1139
  %v1149 = vmul.f32 %v519, %v1140
  %v1150 = vmul.f32 %v521, %v1141
  %v1151 = vmul.f32 %v523, %v1142
  %v1152 = vmul.f32 %v525, %v1143
  %v1153 = vmul.f32 %v527, %v1144
  %v1154 = vmul.f32 %v529, %v1145
  %1155 = vst [vmem:[%s4] sm:$0xff] %v1146
  %1156 = vst [vmem:[%s4 + $0x8] sm:$0xff] %v1147
  %1157 = vst.msk [vmem:[%s4 + $0x10] sm:$0xff] %vm93, %v1148
  %1158 = vst [vmem:[%s4 + $0x18] sm:$0xff] %v1149
  %1159 = vst [vmem:[%s4 + $0x20] sm:$0xff] %v1150
  %1160 = vst.msk [vmem:[%s4 + $0x28] sm:$0xff] %vm93, %v1151
  %1161 = vst [vmem:[%s4 + $0x30] sm:$0xff] %v1152
  %1162 = vst [vmem:[%s4 + $0x38] sm:$0xff] %v1153
  %1163 = vst.msk [vmem:[%s4 + $0x40] sm:$0xff] %vm93, %v1154
  // Predicated region
  $region18: #{net_forward.1} parent=0 // pred_check
    _
  $region19: #{net_forward.1} parent=0 // pred_check_branch
    %1165 = sbr.rel (0) target = $region21
  $region20: #{net_forward.1} parent=0 // pred_region
    _
  $region21: #{net_forward.1} parent=0 // pred_fallthru
    _
  // Predicated region
  $region22: #{net_forward.1} parent=0 // pred_check
    _
  $region23: #{net_forward.1} parent=0 // pred_check_branch
    %1167 = sbr.rel (0) target = $region25
  $region24: #{net_forward.1} parent=0 // pred_region
    _
  $region25: #{net_forward.1} parent=0 // pred_fallthru
    _

</llo_original>
